<compile_context>
chip_gen: v7x
topology: tpu7x:2x2x1
jax: 0.10.0
libtpu: 0.0.40
codegen_flags: <defaults>
</compile_context>

<pallas_src>
import jax
import jax.numpy as jnp
from jax.experimental import pallas as pl
from jax.experimental.pallas import tpu as pltpu


def _round_up(x: int, m: int) -> int:
    return ((x + m - 1) // m) * m


def _sublane_multiple(dtype) -> int:
    # Sub-32-bit dtypes pack along sublanes: (8,128) f32, (16,128) bf16, (32,128) int8/fp8.
    itemsize = jnp.dtype(dtype).itemsize
    return max(8, 32 // max(itemsize, 1))


# ---------------------------------------------------------------------------
# Pallas kernel: streaming FiLM application  out = gamma * feat + beta
# ---------------------------------------------------------------------------
def film_apply_kernel(gb_ref, feat_ref, out_ref):
    # gb_ref:   (tm, 2) f32 -- lane 0 = gamma, lane 1 = beta (per (n, c) row)
    # feat_ref: (tm, tn)    -- lane-dense tile of feat.reshape(N*C, H*W)
    # out_ref:  (tm, tn)
    gb = gb_ref[...]
    gamma = gb[:, 0:1]                       # (tm, 1), broadcast over lanes
    beta = gb[:, 1:2]                        # (tm, 1)
    out_ref[...] = (gamma * feat_ref[...] + beta).astype(out_ref.dtype)


def film_layer(feat, bc_vec, w1, b1, w2, b2, *,
               row_tile=256, lane_tile=4096,
               vmem_limit_bytes=32 * 1024 * 1024):
    """feat: (N, C, H, W); bc_vec: (N, bc_dim); Linear weights as (in, out)."""
    N, C, H, W = feat.shape

    # ---- Stage 1: nano-MLP gamma/beta in plain JAX/XLA (see header note) ----
    h = jnp.maximum(jnp.dot(bc_vec, w1) + b1, 0.0)          # (N, hidden), ReLU
    gb = jnp.dot(h, w2) + b2                                 # (N, 2C)
    gamma = gb[:, :C]                                        # torch.chunk(dim=1)
    beta = gb[:, C:]
    # Pack gamma/beta per flattened (n, c) row into one (N*C, 2) f32 input.
    gb_col = jnp.stack(
        [gamma.reshape(-1), beta.reshape(-1)], axis=-1
    ).astype(jnp.float32)                                    # (R, 2)

    # ---- Stage 2: streaming elementwise FiLM over lane-dense (N*C, H*W) ----
    R, HW = N * C, H * W
    sub = _sublane_multiple(feat.dtype)
    tm = min(_round_up(row_tile, sub), _round_up(R, sub))    # sublane-multiple rows
    tn = min(_round_up(lane_tile, 128), _round_up(HW, 128))  # lane-multiple cols

    feat_flat = feat.reshape(R, HW)                          # contiguous reshape, no copy

    out_flat = pl.pallas_call(
        film_apply_kernel,
        out_shape=jax.ShapeDtypeStruct((R, HW), feat.dtype),
        grid_spec=pltpu.PrefetchScalarGridSpec(
            num_scalar_prefetch=0,
            # Lane axis (j) innermost: gamma/beta block index is constant across the
            # whole row sweep, so its tiny tile is fetched once per row block.
            # pl.cdiv + edge-block masking: no wrapper-side pad/slice copies.
            grid=(pl.cdiv(R, tm), pl.cdiv(HW, tn)),
            in_specs=[
                pl.BlockSpec((tm, 2), lambda i, j: (i, 0)),   # packed gamma/beta
                pl.BlockSpec((tm, tn), lambda i, j: (i, j)),  # feat tile
            ],
            out_specs=pl.BlockSpec((tm, tn), lambda i, j: (i, j)),
        ),
        compiler_params=pltpu.CompilerParams(
            dimension_semantics=("parallel", "parallel"),
            vmem_limit_bytes=vmem_limit_bytes,
        ),
    )(gb_col, feat_flat)

    return out_flat.reshape(N, C, H, W)


def reference_film(feat, bc_vec, w1, b1, w2, b2):
    h = jnp.maximum(bc_vec @ w1 + b1, 0.0)
    gb = h @ w2 + b2
    C = feat.shape[1]
    gamma = gb[:, :C][:, :, None, None]
    beta = gb[:, C:][:, :, None, None]
    return gamma * feat + beta


if __name__ == "__main__":
    # Small shapes consistent with FiLMLayer(bc_dim=8, feat_ch=4, hidden=32)
    N, C, H, W = 2, 4, 16, 16
    bc_dim, hidden = 8, 32

    key = jax.random.PRNGKey(0)
    k_feat, k_bc, k_w1, k_b1, k_w2, k_b2 = jax.random.split(key, 6)

    feat = jax.random.normal(k_feat, (N, C, H, W), dtype=jnp.float32)
    bc_vec = jax.random.normal(k_bc, (N, bc_dim), dtype=jnp.float32)

    # Deterministic synthetic parameters, (in, out) layout
    w1 = jax.random.normal(k_w1, (bc_dim, hidden), dtype=jnp.float32) * (1.0 / jnp.sqrt(bc_dim))
    b1 = jax.random.normal(k_b1, (hidden,), dtype=jnp.float32) * 0.01
    w2 = jax.random.normal(k_w2, (hidden, 2 * C), dtype=jnp.float32) * (1.0 / jnp.sqrt(hidden))
    b2 = jax.random.normal(k_b2, (2 * C,), dtype=jnp.float32) * 0.01

    out = film_layer(feat, bc_vec, w1, b1, w2, b2)
    out = jax.block_until_ready(out)

    ref = reference_film(feat, bc_vec, w1, b1, w2, b2)
    assert out.shape == (N, C, H, W)
    assert jnp.allclose(out, ref, atol=1e-5, rtol=1e-5), "mismatch vs reference"

    print("KERNEL_OK")
</pallas_src>

<mosaic_0001>
module attributes {stable_mosaic.version = 11 : i64} {
  func.func @film_apply_kernel(%arg0: i32, %arg1: i32, %arg2: memref<8x2xf32, #tpu.memory_space<vmem>>, %arg3: memref<8x256xf32, #tpu.memory_space<vmem>>, %arg4: memref<8x256xf32, #tpu.memory_space<vmem>>) attributes {dimension_semantics = [#tpu.dimension_semantics<parallel>, #tpu.dimension_semantics<parallel>], iteration_bounds = array<i64: 1, 1>, scalar_prefetch = 0 : i64, scratch_operands = 0 : i64, tpu.core_type = #tpu.core_type<tc>, window_params = [{transform_indices = @transform_0, window_bounds = array<i64: 8, 2>}, {transform_indices = @transform_1, window_bounds = array<i64: 8, 256>}, {transform_indices = @transform_2, window_bounds = array<i64: 8, 256>}]} {
    %c0 = arith.constant 0 : index
    %c0_0 = arith.constant 0 : index
    %0 = vector.load %arg2[%c0, %c0_0] : memref<8x2xf32, #tpu.memory_space<vmem>>, vector<8x2xf32>
    %1 = vector.extract_strided_slice %0 {offsets = [0, 0], sizes = [8, 1], strides = [1, 1]} : vector<8x2xf32> to vector<8x1xf32>
    %2 = vector.extract_strided_slice %0 {offsets = [0, 1], sizes = [8, 1], strides = [1, 1]} : vector<8x2xf32> to vector<8x1xf32>
    %c0_1 = arith.constant 0 : index
    %c0_2 = arith.constant 0 : index
    %3 = vector.load %arg3[%c0_1, %c0_2] : memref<8x256xf32, #tpu.memory_space<vmem>>, vector<8x256xf32>
    %4 = vector.broadcast %1 : vector<8x1xf32> to vector<8x256xf32>
    %5 = arith.mulf %4, %3 : vector<8x256xf32>
    %6 = vector.broadcast %2 : vector<8x1xf32> to vector<8x256xf32>
    %7 = arith.addf %5, %6 : vector<8x256xf32>
    %c0_3 = arith.constant 0 : index
    %c0_4 = arith.constant 0 : index
    %8 = vector.load %arg4[%c0_3, %c0_4] : memref<8x256xf32, #tpu.memory_space<vmem>>, vector<8x256xf32>
    tpu.vector_store %arg4[%c0_3, %c0_4], %7 {strides = array<i32>} : memref<8x256xf32, #tpu.memory_space<vmem>>, vector<8x256xf32>,
    return
  }
  func.func @transform_0(%arg0: i32, %arg1: i32) -> (i32, i32) {
    %c0_i32 = arith.constant 0 : i32
    %c0_i32_0 = arith.constant 0 : i32
    return %arg0, %c0_i32 : i32, i32
  }
  func.func @transform_1(%arg0: i32, %arg1: i32) -> (i32, i32) {
    %c0_i32 = arith.constant 0 : i32
    return %arg0, %arg1 : i32, i32
  }
  func.func @transform_2(%arg0: i32, %arg1: i32) -> (i32, i32) {
    %c0_i32 = arith.constant 0 : i32
    return %arg0, %arg1 : i32, i32
  }
}

</mosaic_0001>

<llo_original>
// kernel: tpu_custom_call.1
$region0: #{tpu_custom_call.1}
  #allocation0 [shape = 'u32[]', space=smem, size = 0x4, offset = 0x4, fixed_abs, tag = 'smem constant byte address 0x4 - core index']
  #allocation1 [shape = 'u32[144,128]{1,0:T(1,128)}', space=vmem, size = 0x12000, scoped, tag = 'internal scratch']
  %s0 = inlined_call_operand.vmem [shape: f32[8,2], index: 0, kind: input, shape index: {}]
  %s1 = inlined_call_operand.hbm [shape: f32[8,256], index: 1, kind: input, shape index: {}]
  %s2 = inlined_call_operand.hbm [shape: f32[8,256], index: 2, kind: output, shape index: {}]
  %s3 = sld [smem:[#allocation0]]
  $region22: #{tpu_custom_call.1} parent=0
    _
  %s5 = ssub.s32 1, %s3
  %s6 = scalar_select 0, %s5, %s3
  $region1: #{tpu_custom_call.1} parent=0
    #allocation2 [shape = 'u8[8192]{0}', space=vmem, size = 0x2000, scoped, tag = 'input window, operand 1, single buffered']
    #allocation3 [shape = 's32[1]{0}', space=sflag, size = 0x4, scoped, tag = 'scoped memory for tpu_custom_call.1']
    #allocation4 [shape = 's32[1]{0}', space=sflag, size = 0x4, scoped, tag = 'scoped memory for tpu_custom_call.1']
    #allocation5 [shape = 'u8[8192]{0}', space=vmem, size = 0x2000, scoped, tag = 'output window, operand 0, single buffered']
    %7 = vsyncpa [#allocation3], 0
    %8 = vsyncpa [#allocation4], 0
    // Predicated region
    $region2: #{tpu_custom_call.1} parent=1 // pred_check
      _
    $region3: #{tpu_custom_call.1} parent=1 // pred_check_branch
      %10 = sbr.rel (0) target = $region5
    $region4: #{tpu_custom_call.1} parent=1 // pred_region
      _
    $region5: #{tpu_custom_call.1} parent=1 // pred_fallthru
      _
    // Predicated region
    $region6: #{tpu_custom_call.1} parent=1 // pred_check
      _
    $region7: #{tpu_custom_call.1} parent=1 // pred_check_branch
      %12 = sbr.rel (0) target = $region9
    $region8: #{tpu_custom_call.1} parent=1 // pred_region
      %s14 = ssub.s32 256, 256
      %15 = vsyncadd [#allocation3], %s14
      %s17 = sshll.u32 [#allocation2], 4
      %s18 = int_to_ptr.vmem [resolvable:$true] %s17
      %20 = dma.hbm_to_vmem [thread:$0]  %s1, 256, %s18, [#allocation3]
    $region9: #{tpu_custom_call.1} parent=1 // pred_fallthru
      _
    // Predicated region
    $region10: #{tpu_custom_call.1} parent=1 // pred_check
      _
    $region11: #{tpu_custom_call.1} parent=1 // pred_check_branch
      %22 = sbr.rel (0) target = $region13
    $region12: #{tpu_custom_call.1} parent=1 // pred_region
      %23 = dma.done [#allocation3], 256
    $region13: #{tpu_custom_call.1} parent=1 // pred_fallthru
      _
    %v24 = vld [vmem:[%s0] sm:$0xff]
    %v25 = vld [vmem:[#allocation2] sm:$0xff]
    %v26 = vld [vmem:[#allocation2 + $0x8] sm:$0xff]
    %28 = vset.pattern.permute.xlu0 0
    %29 = vperm.xlu0 %28, %v24
    %v30 = vpop.permute.xlu0 %29
    %v32 = vmul.f32 %v30, %v25
    %v33 = vmul.f32 %v30, %v26
    %34 = vset.pattern.permute.xlu0 1
    %35 = vperm.xlu0 %34, %v24
    %v36 = vpop.permute.xlu0 %35
    %v38 = vadd.f32 %v32, %v36
    %v39 = vadd.f32 %v33, %v36
    %40 = vst [vmem:[#allocation5] sm:$0xff] %v38
    %41 = vst [vmem:[#allocation5 + $0x8] sm:$0xff] %v39
    // Predicated region
    $region14: #{tpu_custom_call.1} parent=1 // pred_check
      _
    $region15: #{tpu_custom_call.1} parent=1 // pred_check_branch
      %43 = sbr.rel (0) target = $region17
    $region16: #{tpu_custom_call.1} parent=1 // pred_region
      %s45 = ssub.s32 256, 256
      %46 = vsyncadd [#allocation4], %s45
      %s48 = sshll.u32 [#allocation5], 4
      %s49 = int_to_ptr.vmem [resolvable:$true] %s48
      %51 = dma.vmem_to_hbm [thread:$0]  %s49, 256, %s2, [#allocation4]
    $region17: #{tpu_custom_call.1} parent=1 // pred_fallthru
      _
    // Predicated region
    $region18: #{tpu_custom_call.1} parent=1 // pred_check
      _
    $region19: #{tpu_custom_call.1} parent=1 // pred_check_branch
      %53 = sbr.rel (0) target = $region21
    $region20: #{tpu_custom_call.1} parent=1 // pred_region
      %54 = dma.done [#allocation4], 256
    $region21: #{tpu_custom_call.1} parent=1 // pred_fallthru
      _
    %55 = vsyncpa [#allocation3], 1
    %56 = vsyncpa [#allocation4], 1

</llo_original>
